<compile_context>
chip_gen: v5e
topology: v5e:2x2
jax: 0.10.0
libtpu: 0.0.40
codegen_flags: <defaults>
</compile_context>

<pallas_src>
import math

import jax
import jax.numpy as jnp
from jax.experimental import pallas as pl
from jax.experimental.pallas import tpu as pltpu


# ----------------------------- Pallas kernel ------------------------------- #

def _linear_relu_kernel(x_ref, w_ref, b_ref, o_ref):
    # x_ref: (tm, K)   w_ref: (K, N)   b_ref: (1, N)   o_ref: (tm, N)
    y = jnp.dot(x_ref[...], w_ref[...], preferred_element_type=jnp.float32)
    y = y + b_ref[...]
    o_ref[...] = jnp.maximum(y, 0.0).astype(o_ref.dtype)


# ------------------------------- wrapper ------------------------------------ #

def _round_up(x, m):
    return ((x + m - 1) // m) * m


def _choose_row_tile(M, cap=2048):
    """Row tile: full extent for small M, else a multiple of 8 with >=2 grid
    steps (keeps both v7x TensorCores busy) and capped so DMA blocks stay big
    but comfortably inside VMEM on every generation."""
    if M <= 256:
        return M                               # single full-extent block
    n_tiles = max(2, -(-M // cap))             # at least 2 grid steps
    tm = _round_up(-(-M // n_tiles), 8)
    return min(tm, _round_up(M, 8))


def _pick_pack(M, N):
    """Fold p consecutive rows into one lane-dense row when the output width
    would otherwise force masked (partial-lane) stores."""
    if N >= 128:
        return 1
    for p in (4, 2):
        if M % p == 0 and N * p <= 512:
            return p
    return 1


def linear_relu_pallas(x2d, w, b, *, force_pallas=False, fast_path_rows=512):
    """relu(x2d @ w + b).  x2d: (M, K), w: (K, N), b: (N,)."""
    M, K = x2d.shape
    Kw, N = w.shape
    assert K == Kw

    if M == 0:
        return jnp.zeros((0, N), dtype=x2d.dtype)

    if (not force_pallas) and M <= fast_path_rows:
        # Tiny-M fast path: pallas_call fixed overhead dominates the
        # sub-microsecond matmul; let XLA fuse it with surrounding ops.
        return jnp.maximum(x2d @ w + b[None, :], 0.0).astype(x2d.dtype)

    # Lane-density packing: p rows -> 1 row against block_diag(w, ..., w).
    # Row-major reshapes are free; extra contraction terms are exact zeros.
    p = _pick_pack(M, N)
    if p > 1:
        x2d = x2d.reshape(M // p, K * p)
        w = jnp.kron(jnp.eye(p, dtype=w.dtype), w)   # (p*K, p*N) block-diag
        b = jnp.tile(b, p)
    Mp, Kp = x2d.shape
    Np = N * p

    tm = _choose_row_tile(Mp)
    grid = -(-Mp // tm)            # ragged final block handled by Pallas
    b2 = b.reshape(1, Np)

    out = pl.pallas_call(
        _linear_relu_kernel,
        out_shape=jax.ShapeDtypeStruct((Mp, Np), x2d.dtype),
        grid_spec=pltpu.PrefetchScalarGridSpec(
            num_scalar_prefetch=0,
            grid=(grid,),
            in_specs=[
                pl.BlockSpec((tm, Kp), lambda i: (i, 0)),   # x row-tile
                pl.BlockSpec((Kp, Np), lambda i: (0, 0)),   # full weight
                pl.BlockSpec((1, Np), lambda i: (0, 0)),    # bias
            ],
            out_specs=pl.BlockSpec((tm, Np), lambda i: (i, 0)),
        ),
        compiler_params=pltpu.CompilerParams(
            dimension_semantics=("parallel",),
            vmem_limit_bytes=32 * 1024 * 1024,
        ),
    )(x2d, w, b2)

    if p > 1:
        out = out.reshape(M, N)
    return out


# ------------------------------ module port --------------------------------- #

class MAFESubEncoderPallas:
    """JAX/Pallas port of MAFESubEncoder.forward."""

    def __init__(self, input_dim, output_dim, is_sequence_input=False,
                 has_station_dim=False, key=None, force_pallas=False):
        self.input_dim = input_dim
        self.output_dim = output_dim
        self.is_sequence_input = is_sequence_input
        self.has_station_dim = has_station_dim
        self.force_pallas = force_pallas
        if input_dim > 0:
            key = jax.random.PRNGKey(0) if key is None else key
            kw, kb = jax.random.split(key)
            bound = 1.0 / math.sqrt(input_dim)
            # PyTorch Linear weight is (out, in); store transposed (in, out).
            self.w = jax.random.uniform(kw, (input_dim, output_dim),
                                        jnp.float32, -bound, bound)
            self.b = jax.random.uniform(kb, (output_dim,),
                                        jnp.float32, -bound, bound)
        else:
            self.w = None
            self.b = None

    def _fc(self, x2d):
        return linear_relu_pallas(x2d, self.w, self.b,
                                  force_pallas=self.force_pallas)

    def __call__(self, x):
        if self.w is None:
            # fc is None branch: zeros with the same shape logic.
            B = x.shape[0]
            if self.has_station_dim:
                S = x.shape[1]
                return jnp.zeros((B, S, self.output_dim), dtype=x.dtype)
            return jnp.zeros((B, self.output_dim), dtype=x.dtype)

        if self.has_station_dim and self.is_sequence_input:
            B, S, T, F_in = x.shape
            # fc(x)[:, -1, :] == fc(x[:, -1, :]) -> slice last timestep first.
            # TODO(synk): fusing this slice into the BlockSpec would need a
            # width-F_in (=16) lane block or a size-1 sublane block, both of
            # which violate the (8,128) block rule; reading full T in-kernel
            # would cost T x more HBM reads, so the slice stays wrapper-side.
            x2d = x[:, :, -1, :].reshape(B * S, F_in)
            out = self._fc(x2d)
            return out.reshape(B, S, self.output_dim)
        elif (not self.has_station_dim) and self.is_sequence_input:
            B, T, F_in = x.shape
            return self._fc(x[:, -1, :])
        elif self.has_station_dim and (not self.is_sequence_input):
            B, S, F_in = x.shape
            out = self._fc(x.reshape(B * S, F_in))
            return out.reshape(B, S, self.output_dim)
        else:
            return self._fc(x)


# ------------------------------ reference ----------------------------------- #

def _ref_forward(enc, x):
    """Pure-JAX reference matching the PyTorch forward."""
    if enc.w is None:
        B = x.shape[0]
        if enc.has_station_dim:
            return jnp.zeros((B, x.shape[1], enc.output_dim), dtype=x.dtype)
        return jnp.zeros((B, enc.output_dim), dtype=x.dtype)
    fc = lambda t: t @ enc.w + enc.b
    if enc.has_station_dim and enc.is_sequence_input:
        B, S, T, F_in = x.shape
        y = fc(x.reshape(B * S, T, F_in))[:, -1, :].reshape(B, S, -1)
    elif (not enc.has_station_dim) and enc.is_sequence_input:
        y = fc(x)[:, -1, :]
    elif enc.has_station_dim and (not enc.is_sequence_input):
        B, S, F_in = x.shape
        y = fc(x.reshape(B * S, F_in)).reshape(B, S, -1)
    else:
        y = fc(x)
    return jnp.maximum(y, 0.0)


# --------------------------------- main -------------------------------------- #

if __name__ == "__main__":
    key = jax.random.PRNGKey(0)
    F_in, F_out = 16, 32

    # Small shapes (forced through the Pallas path) plus two moderate shapes
    # that exercise the natural Pallas path: multi-tile grid, lane-dense row
    # packing (M % 4 == 0) and a ragged final block (M not a tile multiple).
    cases = [
        # (is_sequence_input, has_station_dim, input shape, force_pallas)
        (True,  True,  (2, 4, 8, F_in),    True),
        (True,  False, (2, 8, F_in),       True),
        (False, True,  (2, 4, F_in),       True),
        (False, False, (2, F_in),          True),
        (True,  True,  (128, 17, 8, F_in), False),  # M=2176: pack=4, grid=2
        (False, True,  (5, 131, F_in),     False),  # M=655:  pack=1, ragged tile
    ]

    ok = True
    for i, (seq, stat, shape, force) in enumerate(cases):
        kx, key = jax.random.split(key)
        x = jax.random.normal(kx, shape, dtype=jnp.float32)
        enc = MAFESubEncoderPallas(F_in, F_out, is_sequence_input=seq,
                                   has_station_dim=stat,
                                   key=jax.random.PRNGKey(0),
                                   force_pallas=force)
        out = jax.block_until_ready(enc(x))
        ref = _ref_forward(enc, x)
        if out.shape != ref.shape or not jnp.allclose(out, ref,
                                                      atol=1e-4, rtol=1e-4):
            ok = False
            print(f"case {i} mismatch: shape {out.shape} vs {ref.shape}")

    # fc is None branch (input_dim == 0): pure-JAX zeros, no kernel needed.
    enc0 = MAFESubEncoderPallas(0, F_out, is_sequence_input=False,
                                has_station_dim=True)
    x0 = jnp.zeros((2, 4, 3), dtype=jnp.float32)
    out0 = jax.block_until_ready(enc0(x0))
    if out0.shape != (2, 4, F_out) or not jnp.all(out0 == 0):
        ok = False
        print("fc=None case mismatch")

    if ok:
        print("KERNEL_OK")
</pallas_src>

<mosaic_0001>
module attributes {stable_mosaic.version = 11 : i64} {
  func.func @_linear_relu_kernel(%arg0: i32, %arg1: memref<2x64xf32, #tpu.memory_space<vmem>>, %arg2: memref<64x128xf32, #tpu.memory_space<vmem>>, %arg3: memref<1x128xf32, #tpu.memory_space<vmem>>, %arg4: memref<2x128xf32, #tpu.memory_space<vmem>>) attributes {dimension_semantics = [#tpu.dimension_semantics<parallel>], iteration_bounds = array<i64: 1>, scalar_prefetch = 0 : i64, scratch_operands = 0 : i64, tpu.core_type = #tpu.core_type<tc>, window_params = [{transform_indices = @transform_0, window_bounds = array<i64: 2, 64>}, {pipeline_mode = #tpu.pipeline_mode<synchronous>, transform_indices = @transform_1, window_bounds = array<i64: 64, 128>}, {pipeline_mode = #tpu.pipeline_mode<synchronous>, transform_indices = @transform_2, window_bounds = array<i64: 1, 128>}, {transform_indices = @transform_3, window_bounds = array<i64: 2, 128>}]} {
    %c0 = arith.constant 0 : index
    %c0_0 = arith.constant 0 : index
    %0 = vector.load %arg1[%c0, %c0_0] : memref<2x64xf32, #tpu.memory_space<vmem>>, vector<2x64xf32>
    %c0_1 = arith.constant 0 : index
    %c0_2 = arith.constant 0 : index
    %1 = vector.load %arg2[%c0_1, %c0_2] : memref<64x128xf32, #tpu.memory_space<vmem>>, vector<64x128xf32>
    %cst = arith.constant dense<0.000000e+00> : vector<2x128xf32>
    %2 = tpu.matmul %0, %1, %cst {dimension_numbers = #tpu.dot_dimension_numbers<[1], [0], [0], [1], [0, 0, 1, 1], [], []>} : vector<2x64xf32>, vector<64x128xf32>, vector<2x128xf32> -> vector<2x128xf32>
    %c0_3 = arith.constant 0 : index
    %c0_4 = arith.constant 0 : index
    %3 = vector.load %arg3[%c0_3, %c0_4] : memref<1x128xf32, #tpu.memory_space<vmem>>, vector<1x128xf32>
    %4 = vector.broadcast %3 : vector<1x128xf32> to vector<2x128xf32>
    %5 = arith.addf %2, %4 : vector<2x128xf32>
    %cst_5 = arith.constant 0.000000e+00 : f32
    %6 = vector.broadcast %cst_5 : f32 to vector<2x128xf32>
    %7 = arith.maximumf %5, %6 : vector<2x128xf32>
    %c0_6 = arith.constant 0 : index
    %c0_7 = arith.constant 0 : index
    %8 = vector.load %arg4[%c0_6, %c0_7] : memref<2x128xf32, #tpu.memory_space<vmem>>, vector<2x128xf32>
    tpu.vector_store %arg4[%c0_6, %c0_7], %7 {strides = array<i32>} : memref<2x128xf32, #tpu.memory_space<vmem>>, vector<2x128xf32>,
    return
  }
  func.func @transform_0(%arg0: i32) -> (i32, i32) {
    %c0_i32 = arith.constant 0 : i32
    %c0_i32_0 = arith.constant 0 : i32
    return %arg0, %c0_i32 : i32, i32
  }
  func.func @transform_1(%arg0: i32) -> (i32, i32) {
    %c0_i32 = arith.constant 0 : i32
    %c0_i32_0 = arith.constant 0 : i32
    %c0_i32_1 = arith.constant 0 : i32
    return %c0_i32, %c0_i32_0 : i32, i32
  }
  func.func @transform_2(%arg0: i32) -> (i32, i32) {
    %c0_i32 = arith.constant 0 : i32
    %c0_i32_0 = arith.constant 0 : i32
    %c0_i32_1 = arith.constant 0 : i32
    return %c0_i32, %c0_i32_0 : i32, i32
  }
  func.func @transform_3(%arg0: i32) -> (i32, i32) {
    %c0_i32 = arith.constant 0 : i32
    %c0_i32_0 = arith.constant 0 : i32
    return %arg0, %c0_i32 : i32, i32
  }
}

</mosaic_0001>

<llo_original>
// kernel: tpu_custom_call.1
$region0: #{tpu_custom_call.1}
  #allocation0 [shape = 'u32[]', space=smem, size = 0x4, offset = 0x4, fixed_abs, tag = 'smem constant byte address 0x4 - core index']
  #allocation1 [shape = 'u32[72,128]{1,0:T(1,128)}', space=vmem, size = 0x9000, scoped, tag = 'internal scratch']
  %s0 = inlined_call_operand.hbm [shape: f32[2,64], index: 0, kind: input, shape index: {}]
  %s1 = inlined_call_operand.hbm [shape: f32[64,128], index: 1, kind: input, shape index: {}]
  %s2 = inlined_call_operand.vmem [shape: f32[1,128], index: 2, kind: input, shape index: {}]
  %s3 = inlined_call_operand.hbm [shape: f32[2,128], index: 3, kind: output, shape index: {}]
  %s4 = sld [smem:[#allocation0]]
  $region30: #{tpu_custom_call.1} parent=0
    _
  %s6 = ssub.s32 1, %s4
  %s7 = scalar_select 0, %s6, %s4
  $region1: #{tpu_custom_call.1} parent=0
    #allocation2 [shape = 'u8[1024]{0}', space=vmem, size = 0x400, scoped, tag = 'input window, operand 0, single buffered']
    #allocation3 [shape = 's32[1]{0}', space=sflag, size = 0x4, scoped, tag = 'scoped memory for tpu_custom_call.1']
    #allocation4 [shape = 's32[1]{0}', space=sflag, size = 0x4, scoped, tag = 'scoped memory for tpu_custom_call.1']
    #allocation5 [shape = 'u8[32768]{0}', space=vmem, size = 0x8000, scoped, tag = 'input window, operand 1, single buffered']
    #allocation6 [shape = 's32[1]{0}', space=sflag, size = 0x4, scoped, tag = 'scoped memory for tpu_custom_call.1']
    #allocation7 [shape = 'u8[1024]{0}', space=vmem, size = 0x400, scoped, tag = 'output window, operand 0, single buffered']
    %8 = vsyncpa [#allocation3], 0
    %9 = vsyncpa [#allocation6], 0
    %10 = vsyncpa [#allocation4], 0
    // Predicated region
    $region2: #{tpu_custom_call.1} parent=1 // pred_check
      _
    $region3: #{tpu_custom_call.1} parent=1 // pred_check_branch
      %12 = sbr.rel (0) target = $region5
    $region4: #{tpu_custom_call.1} parent=1 // pred_region
      %14 = vsyncadd [#allocation3], 0
      %s16 = sshll.u32 %s0, 4
      %s17 = int_to_ptr.hbm [resolvable:$true] %s16
      %s18 = sshll.u32 [#allocation2], 4
      %s19 = int_to_ptr.vmem [resolvable:$true] %s18
      %21 = dma.hbm_to_vmem [thread:$0]  %s17, 32, %s19, [#allocation3]
    $region5: #{tpu_custom_call.1} parent=1 // pred_fallthru
      _
    // Predicated region
    $region6: #{tpu_custom_call.1} parent=1 // pred_check
      _
    $region7: #{tpu_custom_call.1} parent=1 // pred_check_branch
      %23 = sbr.rel (0) target = $region9
    $region8: #{tpu_custom_call.1} parent=1 // pred_region
      %25 = vsyncadd [#allocation6], 0
      %s26 = sshll.u32 %s1, 4
      %s27 = int_to_ptr.hbm [resolvable:$true] %s26
      %s28 = sshll.u32 [#allocation5], 4
      %s29 = int_to_ptr.vmem [resolvable:$true] %s28
      %34 = dma.hbm_to_vmem [thread:$0]  %s27, 1024, %s29, [#allocation6], 128, 128, 8
    $region9: #{tpu_custom_call.1} parent=1 // pred_fallthru
      _
    // Predicated region
    $region10: #{tpu_custom_call.1} parent=1 // pred_check
      _
    $region11: #{tpu_custom_call.1} parent=1 // pred_check_branch
      %36 = sbr.rel (0) target = $region13
    $region12: #{tpu_custom_call.1} parent=1 // pred_region
      _
    $region13: #{tpu_custom_call.1} parent=1 // pred_fallthru
      _
    // Predicated region
    $region14: #{tpu_custom_call.1} parent=1 // pred_check
      _
    $region15: #{tpu_custom_call.1} parent=1 // pred_check_branch
      %38 = sbr.rel (0) target = $region17
    $region16: #{tpu_custom_call.1} parent=1 // pred_region
      %40 = dma.done [#allocation3], 32
    $region17: #{tpu_custom_call.1} parent=1 // pred_fallthru
      _
    // Predicated region
    $region18: #{tpu_custom_call.1} parent=1 // pred_check
      _
    $region19: #{tpu_custom_call.1} parent=1 // pred_check_branch
      %42 = sbr.rel (0) target = $region21
    $region20: #{tpu_custom_call.1} parent=1 // pred_region
      %44 = dma.done [#allocation6], 1024
    $region21: #{tpu_custom_call.1} parent=1 // pred_fallthru
      _
    %v45 = vld [vmem:[#allocation2] sm:$0x3]
    %v46 = vld [vmem:[#allocation5] sm:$0xff]
    %v47 = vld [vmem:[#allocation5 + $0x8] sm:$0xff]
    %v48 = vld [vmem:[#allocation5 + $0x10] sm:$0xff]
    %v49 = vld [vmem:[#allocation5 + $0x18] sm:$0xff]
    %v50 = vld [vmem:[#allocation5 + $0x20] sm:$0xff]
    %v51 = vld [vmem:[#allocation5 + $0x28] sm:$0xff]
    %v52 = vld [vmem:[#allocation5 + $0x30] sm:$0xff]
    %v53 = vld [vmem:[#allocation5 + $0x38] sm:$0xff]
    %v54 = vld [vmem:[%s2] sm:$0x1]
    %v56 = vperm.slane %v54, 0
    %vm58 = vcmask 523264
    %v60 = vsel %vm58, %v45, 0
    %62 = vmatpush.msra.mxu0 0.0
    %63 = vmatpush.msra.mxu0 0.0
    %64 = vmatpush.msra.mxu0 0.0
    %65 = vmatpush.msra.mxu0 0.0
    %66 = vmatpush.msra.mxu0 0.0
    %67 = vmatpush.msra.mxu0 0.0
    %68 = vmatpush.msra.mxu0 0.0
    %69 = vmatpush.msra.mxu0 0.0
    %70 = vmatpush.msra.mxu0 %v53
    %71 = vmatpush.msra.mxu0 %v52
    %72 = vmatpush.msra.mxu0 %v51
    %73 = vmatpush.msra.mxu0 %v50
    %74 = vmatpush.msra.mxu0 %v49
    %75 = vmatpush.msra.mxu0 %v48
    %76 = vmatpush.msra.mxu0 %v47
    %77 = vmatpush.msra.mxu0 %v46
    %78 = vmatmul.f32.gmra.mxu0 %v60
    %v79 = vpop.f32.mrf.mxu0
    %v80 = vadd.f32 %v56, %v79
    %81 = vdwg.mxu0
    %v82 = vmax.f32 %v80, 0.0
    %83 = vst [vmem:[#allocation7] sm:$0x3] %v82
    // Predicated region
    $region22: #{tpu_custom_call.1} parent=1 // pred_check
      _
    $region23: #{tpu_custom_call.1} parent=1 // pred_check_branch
      %85 = sbr.rel (0) target = $region25
    $region24: #{tpu_custom_call.1} parent=1 // pred_region
      %87 = vsyncadd [#allocation4], 0
      %s89 = sshll.u32 [#allocation7], 4
      %s90 = int_to_ptr.vmem [resolvable:$true] %s89
      %s91 = sshll.u32 %s3, 4
      %s92 = int_to_ptr.hbm [resolvable:$true] %s91
      %94 = dma.vmem_to_hbm [thread:$0]  %s90, 32, %s92, [#allocation4]
    $region25: #{tpu_custom_call.1} parent=1 // pred_fallthru
      _
    // Predicated region
    $region26: #{tpu_custom_call.1} parent=1 // pred_check
      _
    $region27: #{tpu_custom_call.1} parent=1 // pred_check_branch
      %96 = sbr.rel (0) target = $region29
    $region28: #{tpu_custom_call.1} parent=1 // pred_region
      %98 = dma.done [#allocation4], 32
    $region29: #{tpu_custom_call.1} parent=1 // pred_fallthru
      _
    %99 = vsyncpa [#allocation3], 1
    %100 = vsyncpa [#allocation6], 1
    %101 = vsyncpa [#allocation4], 1

</llo_original>
